<compile_context>
chip_gen: v5e
topology: v5e:2x2
jax: 0.10.0
libtpu: 0.0.40
codegen_flags: <defaults>
</compile_context>

<pallas_src>
import functools

import jax
import jax.numpy as jnp
from jax import lax
from jax.experimental import pallas as pl
from jax.experimental.pallas import tpu as pltpu


def _round_up(x, m):
    return (x + m - 1) // m * m


def _vmem_budget_bytes():
    """Generation-aware VMEM budget: ~75% of physical (≈48 MiB v7x, ≈96 MiB v5e/v6e)."""
    cap = 64 * 1024 * 1024  # conservative fallback = v7x physical VMEM
    try:
        info = pltpu.get_tpu_info()
        cap = int(getattr(info, "vmem_capacity_bytes", cap))
    except Exception:
        pass
    return (cap * 3) // 4


def _working_set_bytes(M, Cin, Cout, kh, kw, hb, comp_isz, out_isz):
    """Per-step VMEM working set for a row tile of M = TH*W flat pixels."""
    b = 2 * Cin * M * comp_isz                 # current input tile, double-buffered
    b += 2 * 2 * Cin * hb * comp_isz           # prev/next halo blocks, double-buffered
    b += 2 * Cout * M * out_isz                # output tile, double-buffered
    b += Cin * (M + 2 * hb) * comp_isz         # halo-strip scratch
    b += Cout * M * 4                          # f32 accumulator (vregs / spill)
    b += 2 * (kh * kw * Cout * Cin * comp_isz + Cout * 4)  # resident weights + bias
    return b


def _pick_row_tile(N, H, W, Cin, Cout, kh, kw, halo, hb, budget, comp_isz, out_isz):
    """Largest TH dividing H with TH*W a multiple of the halo block that fits `budget`.

    Prefers tilings that leave >= 2 parallel grid iterations (N * n_h >= 2) so
    both v7x TensorCores can be used.
    """
    divisors = [d for d in range(1, H + 1) if H % d == 0]
    cands = [d for d in divisors if (d * W) % hb == 0] or [H]
    fitting = [d for d in cands
               if _working_set_bytes(d * W, Cin, Cout, kh, kw, hb,
                                     comp_isz, out_isz) <= budget]
    if not fitting:
        fitting = [min(cands)]
    if N == 1:
        multi = [d for d in fitting if H // d >= 2]
        if multi:
            return max(multi)
    return max(fitting)


def _conv_bn_relu_kernel(x_prev_ref, x_cur_ref, x_next_ref, w_ref, b_ref,
                         o_ref, xhalo_ref, *, kh, kw, pad, W, TH, halo, hb):
    # x_cur_ref:  (1, Cin, M)      current flat row tile, M = TH*W
    # x_prev_ref: (1, Cin, hb)     tail block of tile h-1   (halo source)
    # x_next_ref: (1, Cin, hb)     head block of tile h+1   (halo source)
    # w_ref:      (kh*kw, Cout, Cin) BN-scale-folded per-tap weights
    # b_ref:      (Cout, 1)        folded BN bias (f32)
    # o_ref:      (1, Cout, M)     output tile (flattened NCHW order)
    # xhalo_ref:  (Cin, M + 2*hb)  halo-strip scratch; current tile at offset hb
    M = TH * W
    base = hb - halo                      # first strip position any tap reads
    h = pl.program_id(1)
    n_h = pl.num_programs(1)
    cin = xhalo_ref.shape[0]
    cout = o_ref.shape[1]
    cdt = xhalo_ref.dtype

    # ---- current tile: lane-aligned copy into the strip (no relayout) ----
    xhalo_ref[:, pl.ds(hb, M)] = x_cur_ref[0]

    # ---- top halo: previous-tile tail, or zeros at the image top only ----
    @pl.when(h > 0)
    def _():
        xhalo_ref[:, pl.ds(base, halo)] = x_prev_ref[0, :, pl.ds(hb - halo, halo)]

    @pl.when(h == 0)
    def _():
        xhalo_ref[:, pl.ds(base, halo)] = jnp.zeros((cin, halo), cdt)

    # ---- bottom halo: next-tile head, or zeros at the image bottom only ----
    @pl.when(h < n_h - 1)
    def _():
        xhalo_ref[:, pl.ds(hb + M, halo)] = x_next_ref[0, :, pl.ds(0, halo)]

    @pl.when(h == n_h - 1)
    def _():
        xhalo_ref[:, pl.ds(hb + M, halo)] = jnp.zeros((cin, halo), cdt)

    # ---- W-border wrap masks, generated in-kernel (no HBM operand) ----
    col = lax.broadcasted_iota(jnp.int32, (1, M), 1) % W
    masks = {}
    for j in range(kw):
        if j == pad:
            continue  # center column never wraps
        masks[j] = ((col >= pad - j) & (col < W + pad - j)).astype(cdt)

    # ---- kh*kw small MXU matmuls accumulated in f32 (no materialized im2col) ----
    acc = jnp.zeros((cout, M), jnp.float32)
    for i in range(kh):
        for j in range(kw):
            tap = xhalo_ref[:, pl.ds(base + i * W + j, M)]   # static lane-shifted slice
            if j != pad:
                tap = tap * masks[j]
            acc = acc + jnp.dot(w_ref[i * kw + j], tap,
                                preferred_element_type=jnp.float32)

    # ---- folded-BN bias + ReLU epilogue in f32, single cast at the store ----
    y = jnp.maximum(acc + b_ref[...], 0.0)
    o_ref[0] = y.astype(o_ref.dtype)


def conv_block_forward(x_nchw, weight, gamma, beta, running_mean, running_var,
                       *, stride=1, padding=1, eps=1e-5,
                       compute_dtype=jnp.bfloat16, out_dtype=None):
    """ConvBlock forward: Conv2d(k, pad=k//2, s=1, bias=False) -> BN(eval) -> ReLU.

    x_nchw: (N, Cin, H, W), weight: (Cout, Cin, kh, kw) (PyTorch conventions).
    Returns (N, Cout, H, W) in `out_dtype` (defaults to the input dtype).
    """
    N, Cin, H, W = x_nchw.shape
    Cout, Cin_w, kh, kw = weight.shape
    assert Cin_w == Cin
    assert stride == 1 and kh == kw and padding == kh // 2, (
        "implemented for the ConvBlock defaults: stride=1, 'same' odd kernel")
    out_dtype = x_nchw.dtype if out_dtype is None else out_dtype

    pad = padding
    halo = pad * (W + 1)                       # flat halo: pad rows + pad columns
    halo_blk = _round_up(halo, 128)            # lane-aligned halo fetch block

    comp_isz = jnp.dtype(compute_dtype).itemsize
    out_isz = jnp.dtype(out_dtype).itemsize
    budget = _vmem_budget_bytes()

    TH = _pick_row_tile(N, H, W, Cin, Cout, kh, kw, halo, halo_blk, budget,
                        comp_isz, out_isz)
    n_h = H // TH
    M = TH * W
    assert M >= halo, "image too small for the flat-halo convolution scheme"

    if M % halo_blk == 0:
        hb = halo_blk
        MB = M // hb                           # halo blocks per row tile
        total_hb = (H * W) // hb               # halo blocks over the whole image
    else:
        # Fallback: single full-height tile; halo blocks are never consumed.
        assert n_h == 1
        hb, MB, total_hb = M, 1, 1

    # ---- HBM-side glue: only free reshapes + the compute-dtype cast ----
    x_flat = x_nchw.reshape(N, Cin, H * W).astype(compute_dtype)

    scale = gamma.astype(jnp.float32) * lax.rsqrt(running_var.astype(jnp.float32) + eps)
    # (Cout, Cin, kh, kw) -> (kh*kw, Cout, Cin), BN scale folded into the weights.
    w3d = jnp.transpose(weight.astype(jnp.float32), (2, 3, 0, 1)).reshape(kh * kw, Cout, Cin)
    w3d = (w3d * scale[None, :, None]).astype(compute_dtype)
    bias = (beta.astype(jnp.float32)
            - running_mean.astype(jnp.float32) * scale).reshape(Cout, 1)

    def prev_map(n, h):                        # tail block of tile h-1 (clamped)
        return (n, 0, jnp.maximum(h * MB - 1, 0))

    def next_map(n, h):                        # head block of tile h+1 (clamped)
        return (n, 0, jnp.minimum((h + 1) * MB, total_hb - 1))

    kernel = functools.partial(_conv_bn_relu_kernel,
                               kh=kh, kw=kw, pad=pad, W=W, TH=TH,
                               halo=halo, hb=hb)

    out_flat = pl.pallas_call(
        kernel,
        out_shape=jax.ShapeDtypeStruct((N, Cout, H * W), out_dtype),
        grid_spec=pltpu.PrefetchScalarGridSpec(
            num_scalar_prefetch=0,
            grid=(N, n_h),
            in_specs=[
                pl.BlockSpec((1, Cin, hb), prev_map),                 # halo-sized prev
                pl.BlockSpec((1, Cin, M), lambda n, h: (n, 0, h)),    # current tile
                pl.BlockSpec((1, Cin, hb), next_map),                 # halo-sized next
                pl.BlockSpec((kh * kw, Cout, Cin), lambda n, h: (0, 0, 0)),  # weights
                pl.BlockSpec((Cout, 1), lambda n, h: (0, 0)),         # folded BN bias
            ],
            out_specs=pl.BlockSpec((1, Cout, M), lambda n, h: (n, 0, h)),
            scratch_shapes=[
                pltpu.VMEM((Cin, M + 2 * hb), compute_dtype),         # halo strip
            ],
        ),
        compiler_params=pltpu.CompilerParams(
            dimension_semantics=("parallel", "parallel"),
            vmem_limit_bytes=int(budget),
        ),
    )(x_flat, x_flat, x_flat, w3d, bias)

    return out_flat.reshape(N, Cout, H, W)


def _reference(x_nchw, weight, gamma, beta, running_mean, running_var,
               *, padding=1, eps=1e-5):
    """Pure-JAX reference (lax conv + eval BN + ReLU) for verification."""
    y = lax.conv_general_dilated(
        x_nchw.astype(jnp.float32), weight.astype(jnp.float32),
        window_strides=(1, 1), padding=[(padding, padding), (padding, padding)],
        dimension_numbers=("NCHW", "OIHW", "NCHW"))
    scale = gamma / jnp.sqrt(running_var + eps)
    bias = beta - running_mean * scale
    y = y * scale[None, :, None, None] + bias[None, :, None, None]
    return jnp.maximum(y, 0.0)


if __name__ == "__main__":
    key = jax.random.PRNGKey(0)
    k_x, k_w, k_g, k_b, k_m, k_v = jax.random.split(key, 6)

    N, Cin, H, W = 2, 4, 16, 16
    Cout, KH, KW = 8, 3, 3

    x = jax.random.normal(k_x, (N, Cin, H, W), dtype=jnp.float32)
    weight = 0.1 * jax.random.normal(k_w, (Cout, Cin, KH, KW), dtype=jnp.float32)
    gamma = 1.0 + 0.1 * jax.random.normal(k_g, (Cout,), dtype=jnp.float32)
    beta = 0.1 * jax.random.normal(k_b, (Cout,), dtype=jnp.float32)
    running_mean = 0.1 * jax.random.normal(k_m, (Cout,), dtype=jnp.float32)
    running_var = jnp.abs(1.0 + 0.1 * jax.random.normal(k_v, (Cout,), dtype=jnp.float32))

    ref = _reference(x, weight, gamma, beta, running_mean, running_var)

    # Fast path: bf16 DMA/MXU operands, f32 accumulation + epilogue.
    out = conv_block_forward(x, weight, gamma, beta, running_mean, running_var)
    out = jax.block_until_ready(out)
    assert out.shape == (N, Cout, H, W)
    assert jnp.allclose(out, ref, atol=3e-2, rtol=3e-2), "bf16 kernel mismatch vs reference"

    # Float32 path for a tight numerical check of the fused conv + BN + ReLU.
    out32 = conv_block_forward(x, weight, gamma, beta, running_mean, running_var,
                               compute_dtype=jnp.float32)
    out32 = jax.block_until_ready(out32)
    assert jnp.allclose(out32, ref, atol=1e-4, rtol=1e-4), "f32 kernel mismatch vs reference"

    print("KERNEL_OK")
</pallas_src>

<mosaic_0001>
module attributes {stable_mosaic.version = 11 : i64} {
  func.func @_conv_bn_relu_kernel(%arg0: i32, %arg1: i32, %arg2: memref<1x4x128xbf16, #tpu.memory_space<vmem>>, %arg3: memref<1x4x256xbf16, #tpu.memory_space<vmem>>, %arg4: memref<1x4x128xbf16, #tpu.memory_space<vmem>>, %arg5: memref<9x8x4xbf16, #tpu.memory_space<vmem>>, %arg6: memref<8x1xf32, #tpu.memory_space<vmem>>, %arg7: memref<1x8x256xf32, #tpu.memory_space<vmem>>, %arg8: memref<4x512xbf16, #tpu.memory_space<vmem>>) attributes {dimension_semantics = [#tpu.dimension_semantics<parallel>, #tpu.dimension_semantics<parallel>], iteration_bounds = array<i64: 2, 1>, scalar_prefetch = 0 : i64, scratch_operands = 1 : i64, tpu.core_type = #tpu.core_type<tc>, window_params = [{transform_indices = @transform_0, window_bounds = array<i64: 1, 4, 128>}, {transform_indices = @transform_1, window_bounds = array<i64: 1, 4, 256>}, {transform_indices = @transform_2, window_bounds = array<i64: 1, 4, 128>}, {pipeline_mode = #tpu.pipeline_mode<synchronous>, transform_indices = @transform_3, window_bounds = array<i64: 9, 8, 4>}, {pipeline_mode = #tpu.pipeline_mode<synchronous>, transform_indices = @transform_4, window_bounds = array<i64: 8, 1>}, {transform_indices = @transform_5, window_bounds = array<i64: 1, 8, 256>}]} {
    %c0 = arith.constant 0 : index
    %c0_0 = arith.constant 0 : index
    %c0_1 = arith.constant 0 : index
    %0 = vector.load %arg3[%c0, %c0_0, %c0_1] : memref<1x4x256xbf16, #tpu.memory_space<vmem>>, vector<1x4x256xbf16>
    %1 = vector.shape_cast %0 : vector<1x4x256xbf16> to vector<4x256xbf16>
    %c0_2 = arith.constant 0 : index
    %c128 = arith.constant 128 : index
    %2 = vector.load %arg8[%c0_2, %c128] : memref<4x512xbf16, #tpu.memory_space<vmem>>, vector<4x256xbf16>
    tpu.vector_store %arg8[%c0_2, %c128], %1 {strides = array<i32>} : memref<4x512xbf16, #tpu.memory_space<vmem>>, vector<4x256xbf16>,
    %c0_i32 = arith.constant 0 : i32
    %3 = arith.cmpi sgt, %arg1, %c0_i32 : i32
    %4 = arith.extui %3 : i1 to i32
    %c0_i32_3 = arith.constant 0 : i32
    %5 = arith.cmpi ne, %4, %c0_i32_3 : i32
    scf.if %5 {
      %c0_59 = arith.constant 0 : index
      %c0_60 = arith.constant 0 : index
      %c111_61 = arith.constant 111 : index
      %114 = vector.load %arg2[%c0_59, %c0_60, %c111_61] : memref<1x4x128xbf16, #tpu.memory_space<vmem>>, vector<1x4x17xbf16>
      %115 = vector.shape_cast %114 : vector<1x4x17xbf16> to vector<4x17xbf16>
      %c0_62 = arith.constant 0 : index
      %c111_63 = arith.constant 111 : index
      %116 = vector.load %arg8[%c0_62, %c111_63] : memref<4x512xbf16, #tpu.memory_space<vmem>>, vector<4x17xbf16>
      tpu.vector_store %arg8[%c0_62, %c111_63], %115 {strides = array<i32>} : memref<4x512xbf16, #tpu.memory_space<vmem>>, vector<4x17xbf16>,
    } else {
    }
    %c0_i32_4 = arith.constant 0 : i32
    %6 = arith.cmpi eq, %arg1, %c0_i32_4 : i32
    %7 = arith.extui %6 : i1 to i32
    %c0_i32_5 = arith.constant 0 : i32
    %8 = arith.cmpi ne, %7, %c0_i32_5 : i32
    scf.if %8 {
      %cst_59 = arith.constant 0.000000e+00 : bf16
      %114 = vector.broadcast %cst_59 : bf16 to vector<4x17xbf16>
      %c0_60 = arith.constant 0 : index
      %c111_61 = arith.constant 111 : index
      %115 = vector.load %arg8[%c0_60, %c111_61] : memref<4x512xbf16, #tpu.memory_space<vmem>>, vector<4x17xbf16>
      tpu.vector_store %arg8[%c0_60, %c111_61], %114 {strides = array<i32>} : memref<4x512xbf16, #tpu.memory_space<vmem>>, vector<4x17xbf16>,
    } else {
    }
    %c0_i32_6 = arith.constant 0 : i32
    %9 = arith.cmpi slt, %arg1, %c0_i32_6 : i32
    %10 = arith.extui %9 : i1 to i32
    %c0_i32_7 = arith.constant 0 : i32
    %11 = arith.cmpi ne, %10, %c0_i32_7 : i32
    scf.if %11 {
      %c0_59 = arith.constant 0 : index
      %c0_60 = arith.constant 0 : index
      %c0_61 = arith.constant 0 : index
      %114 = vector.load %arg4[%c0_59, %c0_60, %c0_61] : memref<1x4x128xbf16, #tpu.memory_space<vmem>>, vector<1x4x17xbf16>
      %115 = vector.shape_cast %114 : vector<1x4x17xbf16> to vector<4x17xbf16>
      %c0_62 = arith.constant 0 : index
      %c384 = arith.constant 384 : index
      %116 = vector.load %arg8[%c0_62, %c384] : memref<4x512xbf16, #tpu.memory_space<vmem>>, vector<4x17xbf16>
      tpu.vector_store %arg8[%c0_62, %c384], %115 {strides = array<i32>} : memref<4x512xbf16, #tpu.memory_space<vmem>>, vector<4x17xbf16>,
    } else {
    }
    %c0_i32_8 = arith.constant 0 : i32
    %12 = arith.cmpi eq, %arg1, %c0_i32_8 : i32
    %13 = arith.extui %12 : i1 to i32
    %c0_i32_9 = arith.constant 0 : i32
    %14 = arith.cmpi ne, %13, %c0_i32_9 : i32
    scf.if %14 {
      %cst_59 = arith.constant 0.000000e+00 : bf16
      %114 = vector.broadcast %cst_59 : bf16 to vector<4x17xbf16>
      %c0_60 = arith.constant 0 : index
      %c384 = arith.constant 384 : index
      %115 = vector.load %arg8[%c0_60, %c384] : memref<4x512xbf16, #tpu.memory_space<vmem>>, vector<4x17xbf16>
      tpu.vector_store %arg8[%c0_60, %c384], %114 {strides = array<i32>} : memref<4x512xbf16, #tpu.memory_space<vmem>>, vector<4x17xbf16>,
    } else {
    }
    %15 = tpu.iota {dimensions = array<i32: 1>} : vector<1x256xi32>
    %c16_i32 = arith.constant 16 : i32
    %c0_i32_10 = arith.constant 0 : i32
    %16 = arith.cmpi eq, %c16_i32, %c0_i32_10 : i32
    %c1_i32 = arith.constant 1 : i32
    %17 = arith.select %16, %c1_i32, %c16_i32 : i32
    %18 = vector.broadcast %17 : i32 to vector<1x256xi32>
    %19 = arith.remsi %15, %18 : vector<1x256xi32>
    %c0_i32_11 = arith.constant 0 : i32
    %20 = vector.broadcast %c0_i32_11 : i32 to vector<1x256xi32>
    %21 = arith.cmpi ne, %19, %20 : vector<1x256xi32>
    %c0_i32_12 = arith.constant 0 : i32
    %22 = vector.broadcast %c0_i32_12 : i32 to vector<1x256xi32>
    %23 = arith.cmpi slt, %19, %22 : vector<1x256xi32>
    %c0_i32_13 = arith.constant 0 : i32
    %24 = arith.cmpi slt, %17, %c0_i32_13 : i32
    %25 = vector.broadcast %24 : i1 to vector<1x256xi1>
    %26 = vector.broadcast %25 : vector<1x256xi1> to vector<1x256xi1>
    %27 = arith.xori %23, %26 : vector<1x256xi1>
    %28 = arith.andi %27, %21 : vector<1x256xi1>
    %29 = vector.broadcast %17 : i32 to vector<1x256xi32>
    %30 = arith.addi %19, %29 : vector<1x256xi32>
    %31 = arith.select %28, %30, %19 : vector<1x256xi1>, vector<1x256xi32>
    %c1_i32_14 = arith.constant 1 : i32
    %32 = vector.broadcast %c1_i32_14 : i32 to vector<1x256xi32>
    %33 = arith.cmpi sge, %31, %32 : vector<1x256xi32>
    %c17_i32 = arith.constant 17 : i32
    %34 = vector.broadcast %c17_i32 : i32 to vector<1x256xi32>
    %35 = arith.cmpi slt, %31, %34 : vector<1x256xi32>
    %36 = arith.andi %33, %35 : vector<1x256xi1>
    %37 = arith.extui %36 : vector<1x256xi1> to vector<1x256xi32>
    %38 = arith.sitofp %37 : vector<1x256xi32> to vector<1x256xf32>
    %39 = arith.truncf %38 : vector<1x256xf32> to vector<1x256xbf16>
    %c-1_i32 = arith.constant -1 : i32
    %40 = vector.broadcast %c-1_i32 : i32 to vector<1x256xi32>
    %41 = arith.cmpi sge, %31, %40 : vector<1x256xi32>
    %c15_i32 = arith.constant 15 : i32
    %42 = vector.broadcast %c15_i32 : i32 to vector<1x256xi32>
    %43 = arith.cmpi slt, %31, %42 : vector<1x256xi32>
    %44 = arith.andi %41, %43 : vector<1x256xi1>
    %45 = arith.extui %44 : vector<1x256xi1> to vector<1x256xi32>
    %46 = arith.sitofp %45 : vector<1x256xi32> to vector<1x256xf32>
    %47 = arith.truncf %46 : vector<1x256xf32> to vector<1x256xbf16>
    %cst = arith.constant 0.000000e+00 : f32
    %48 = vector.broadcast %cst : f32 to vector<8x256xf32>
    %c0_15 = arith.constant 0 : index
    %c111 = arith.constant 111 : index
    %49 = vector.load %arg8[%c0_15, %c111] : memref<4x512xbf16, #tpu.memory_space<vmem>>, vector<4x256xbf16>
    %50 = vector.broadcast %39 : vector<1x256xbf16> to vector<4x256xbf16>
    %51 = arith.mulf %49, %50 : vector<4x256xbf16>
    %c0_16 = arith.constant 0 : index
    %c0_17 = arith.constant 0 : index
    %c0_18 = arith.constant 0 : index
    %52 = vector.load %arg5[%c0_16, %c0_17, %c0_18] : memref<9x8x4xbf16, #tpu.memory_space<vmem>>, vector<1x8x4xbf16>
    %53 = vector.shape_cast %52 : vector<1x8x4xbf16> to vector<8x4xbf16>
    %cst_19 = arith.constant dense<0.000000e+00> : vector<8x256xf32>
    %54 = tpu.matmul %53, %51, %cst_19 {dimension_numbers = #tpu.dot_dimension_numbers<[1], [0], [0], [1], [0, 0, 1, 1], [], []>} : vector<8x4xbf16>, vector<4x256xbf16>, vector<8x256xf32> -> vector<8x256xf32>
    %55 = arith.addf %48, %54 : vector<8x256xf32>
    %c0_20 = arith.constant 0 : index
    %c112 = arith.constant 112 : index
    %56 = vector.load %arg8[%c0_20, %c112] : memref<4x512xbf16, #tpu.memory_space<vmem>>, vector<4x256xbf16>
    %c1 = arith.constant 1 : index
    %c0_21 = arith.constant 0 : index
    %c0_22 = arith.constant 0 : index
    %57 = vector.load %arg5[%c1, %c0_21, %c0_22] : memref<9x8x4xbf16, #tpu.memory_space<vmem>>, vector<1x8x4xbf16>
    %58 = vector.shape_cast %57 : vector<1x8x4xbf16> to vector<8x4xbf16>
    %cst_23 = arith.constant dense<0.000000e+00> : vector<8x256xf32>
    %59 = tpu.matmul %58, %56, %cst_23 {dimension_numbers = #tpu.dot_dimension_numbers<[1], [0], [0], [1], [0, 0, 1, 1], [], []>} : vector<8x4xbf16>, vector<4x256xbf16>, vector<8x256xf32> -> vector<8x256xf32>
    %60 = arith.addf %55, %59 : vector<8x256xf32>
    %c0_24 = arith.constant 0 : index
    %c113 = arith.constant 113 : index
    %61 = vector.load %arg8[%c0_24, %c113] : memref<4x512xbf16, #tpu.memory_space<vmem>>, vector<4x256xbf16>
    %62 = vector.broadcast %47 : vector<1x256xbf16> to vector<4x256xbf16>
    %63 = arith.mulf %61, %62 : vector<4x256xbf16>
    %c2 = arith.constant 2 : index
    %c0_25 = arith.constant 0 : index
    %c0_26 = arith.constant 0 : index
    %64 = vector.load %arg5[%c2, %c0_25, %c0_26] : memref<9x8x4xbf16, #tpu.memory_space<vmem>>, vector<1x8x4xbf16>
    %65 = vector.shape_cast %64 : vector<1x8x4xbf16> to vector<8x4xbf16>
    %cst_27 = arith.constant dense<0.000000e+00> : vector<8x256xf32>
    %66 = tpu.matmul %65, %63, %cst_27 {dimension_numbers = #tpu.dot_dimension_numbers<[1], [0], [0], [1], [0, 0, 1, 1], [], []>} : vector<8x4xbf16>, vector<4x256xbf16>, vector<8x256xf32> -> vector<8x256xf32>
    %67 = arith.addf %60, %66 : vector<8x256xf32>
    %c0_28 = arith.constant 0 : index
    %c127 = arith.constant 127 : index
    %68 = vector.load %arg8[%c0_28, %c127] : memref<4x512xbf16, #tpu.memory_space<vmem>>, vector<4x256xbf16>
    %69 = vector.broadcast %39 : vector<1x256xbf16> to vector<4x256xbf16>
    %70 = arith.mulf %68, %69 : vector<4x256xbf16>
    %c3 = arith.constant 3 : index
    %c0_29 = arith.constant 0 : index
    %c0_30 = arith.constant 0 : index
    %71 = vector.load %arg5[%c3, %c0_29, %c0_30] : memref<9x8x4xbf16, #tpu.memory_space<vmem>>, vector<1x8x4xbf16>
    %72 = vector.shape_cast %71 : vector<1x8x4xbf16> to vector<8x4xbf16>
    %cst_31 = arith.constant dense<0.000000e+00> : vector<8x256xf32>
    %73 = tpu.matmul %72, %70, %cst_31 {dimension_numbers = #tpu.dot_dimension_numbers<[1], [0], [0], [1], [0, 0, 1, 1], [], []>} : vector<8x4xbf16>, vector<4x256xbf16>, vector<8x256xf32> -> vector<8x256xf32>
    %74 = arith.addf %67, %73 : vector<8x256xf32>
    %c0_32 = arith.constant 0 : index
    %c128_33 = arith.constant 128 : index
    %75 = vector.load %arg8[%c0_32, %c128_33] : memref<4x512xbf16, #tpu.memory_space<vmem>>, vector<4x256xbf16>
    %c4 = arith.constant 4 : index
    %c0_34 = arith.constant 0 : index
    %c0_35 = arith.constant 0 : index
    %76 = vector.load %arg5[%c4, %c0_34, %c0_35] : memref<9x8x4xbf16, #tpu.memory_space<vmem>>, vector<1x8x4xbf16>
    %77 = vector.shape_cast %76 : vector<1x8x4xbf16> to vector<8x4xbf16>
    %cst_36 = arith.constant dense<0.000000e+00> : vector<8x256xf32>
    %78 = tpu.matmul %77, %75, %cst_36 {dimension_numbers = #tpu.dot_dimension_numbers<[1], [0], [0], [1], [0, 0, 1, 1], [], []>} : vector<8x4xbf16>, vector<4x256xbf16>, vector<8x256xf32> -> vector<8x256xf32>
    %79 = arith.addf %74, %78 : vector<8x256xf32>
    %c0_37 = arith.constant 0 : index
    %c129 = arith.constant 129 : index
    %80 = vector.load %arg8[%c0_37, %c129] : memref<4x512xbf16, #tpu.memory_space<vmem>>, vector<4x256xbf16>
    %81 = vector.broadcast %47 : vector<1x256xbf16> to vector<4x256xbf16>
    %82 = arith.mulf %80, %81 : vector<4x256xbf16>
    %c5 = arith.constant 5 : index
    %c0_38 = arith.constant 0 : index
    %c0_39 = arith.constant 0 : index
    %83 = vector.load %arg5[%c5, %c0_38, %c0_39] : memref<9x8x4xbf16, #tpu.memory_space<vmem>>, vector<1x8x4xbf16>
    %84 = vector.shape_cast %83 : vector<1x8x4xbf16> to vector<8x4xbf16>
    %cst_40 = arith.constant dense<0.000000e+00> : vector<8x256xf32>
    %85 = tpu.matmul %84, %82, %cst_40 {dimension_numbers = #tpu.dot_dimension_numbers<[1], [0], [0], [1], [0, 0, 1, 1], [], []>} : vector<8x4xbf16>, vector<4x256xbf16>, vector<8x256xf32> -> vector<8x256xf32>
    %86 = arith.addf %79, %85 : vector<8x256xf32>
    %c0_41 = arith.constant 0 : index
    %c143 = arith.constant 143 : index
    %87 = vector.load %arg8[%c0_41, %c143] : memref<4x512xbf16, #tpu.memory_space<vmem>>, vector<4x256xbf16>
    %88 = vector.broadcast %39 : vector<1x256xbf16> to vector<4x256xbf16>
    %89 = arith.mulf %87, %88 : vector<4x256xbf16>
    %c6 = arith.constant 6 : index
    %c0_42 = arith.constant 0 : index
    %c0_43 = arith.constant 0 : index
    %90 = vector.load %arg5[%c6, %c0_42, %c0_43] : memref<9x8x4xbf16, #tpu.memory_space<vmem>>, vector<1x8x4xbf16>
    %91 = vector.shape_cast %90 : vector<1x8x4xbf16> to vector<8x4xbf16>
    %cst_44 = arith.constant dense<0.000000e+00> : vector<8x256xf32>
    %92 = tpu.matmul %91, %89, %cst_44 {dimension_numbers = #tpu.dot_dimension_numbers<[1], [0], [0], [1], [0, 0, 1, 1], [], []>} : vector<8x4xbf16>, vector<4x256xbf16>, vector<8x256xf32> -> vector<8x256xf32>
    %93 = arith.addf %86, %92 : vector<8x256xf32>
    %c0_45 = arith.constant 0 : index
    %c144 = arith.constant 144 : index
    %94 = vector.load %arg8[%c0_45, %c144] : memref<4x512xbf16, #tpu.memory_space<vmem>>, vector<4x256xbf16>
    %c7 = arith.constant 7 : index
    %c0_46 = arith.constant 0 : index
    %c0_47 = arith.constant 0 : index
    %95 = vector.load %arg5[%c7, %c0_46, %c0_47] : memref<9x8x4xbf16, #tpu.memory_space<vmem>>, vector<1x8x4xbf16>
    %96 = vector.shape_cast %95 : vector<1x8x4xbf16> to vector<8x4xbf16>
    %cst_48 = arith.constant dense<0.000000e+00> : vector<8x256xf32>
    %97 = tpu.matmul %96, %94, %cst_48 {dimension_numbers = #tpu.dot_dimension_numbers<[1], [0], [0], [1], [0, 0, 1, 1], [], []>} : vector<8x4xbf16>, vector<4x256xbf16>, vector<8x256xf32> -> vector<8x256xf32>
    %98 = arith.addf %93, %97 : vector<8x256xf32>
    %c0_49 = arith.constant 0 : index
    %c145 = arith.constant 145 : index
    %99 = vector.load %arg8[%c0_49, %c145] : memref<4x512xbf16, #tpu.memory_space<vmem>>, vector<4x256xbf16>
    %100 = vector.broadcast %47 : vector<1x256xbf16> to vector<4x256xbf16>
    %101 = arith.mulf %99, %100 : vector<4x256xbf16>
    %c8 = arith.constant 8 : index
    %c0_50 = arith.constant 0 : index
    %c0_51 = arith.constant 0 : index
    %102 = vector.load %arg5[%c8, %c0_50, %c0_51] : memref<9x8x4xbf16, #tpu.memory_space<vmem>>, vector<1x8x4xbf16>
    %103 = vector.shape_cast %102 : vector<1x8x4xbf16> to vector<8x4xbf16>
    %cst_52 = arith.constant dense<0.000000e+00> : vector<8x256xf32>
    %104 = tpu.matmul %103, %101, %cst_52 {dimension_numbers = #tpu.dot_dimension_numbers<[1], [0], [0], [1], [0, 0, 1, 1], [], []>} : vector<8x4xbf16>, vector<4x256xbf16>, vector<8x256xf32> -> vector<8x256xf32>
    %105 = arith.addf %98, %104 : vector<8x256xf32>
    %c0_53 = arith.constant 0 : index
    %c0_54 = arith.constant 0 : index
    %106 = vector.load %arg6[%c0_53, %c0_54] : memref<8x1xf32, #tpu.memory_space<vmem>>, vector<8x1xf32>
    %107 = vector.broadcast %106 : vector<8x1xf32> to vector<8x256xf32>
    %108 = arith.addf %105, %107 : vector<8x256xf32>
    %cst_55 = arith.constant 0.000000e+00 : f32
    %109 = vector.broadcast %cst_55 : f32 to vector<8x256xf32>
    %110 = arith.maximumf %108, %109 : vector<8x256xf32>
    %c0_56 = arith.constant 0 : index
    %c0_57 = arith.constant 0 : index
    %c0_58 = arith.constant 0 : index
    %111 = vector.load %arg7[%c0_56, %c0_57, %c0_58] : memref<1x8x256xf32, #tpu.memory_space<vmem>>, vector<1x8x256xf32>
    %112 = vector.shape_cast %111 : vector<1x8x256xf32> to vector<8x256xf32>
    %113 = vector.shape_cast %110 : vector<8x256xf32> to vector<1x8x256xf32>
    tpu.vector_store %arg7[%c0_56, %c0_57, %c0_58], %113 {strides = array<i32>} : memref<1x8x256xf32, #tpu.memory_space<vmem>>, vector<1x8x256xf32>,
    return
  }
  func.func @transform_0(%arg0: i32, %arg1: i32) -> (i32, i32, i32) {
    %c2_i32 = arith.constant 2 : i32
    %0 = arith.muli %arg1, %c2_i32 : i32
    %c1_i32 = arith.constant 1 : i32
    %1 = arith.subi %0, %c1_i32 : i32
    %c0_i32 = arith.constant 0 : i32
    %2 = arith.maxsi %1, %c0_i32 : i32
    %c0_i32_0 = arith.constant 0 : i32
    %c0_i32_1 = arith.constant 0 : i32
    return %arg0, %c0_i32_0, %2 : i32, i32, i32
  }
  func.func @transform_1(%arg0: i32, %arg1: i32) -> (i32, i32, i32) {
    %c0_i32 = arith.constant 0 : i32
    %c0_i32_0 = arith.constant 0 : i32
    return %arg0, %c0_i32, %arg1 : i32, i32, i32
  }
  func.func @transform_2(%arg0: i32, %arg1: i32) -> (i32, i32, i32) {
    %c1_i32 = arith.constant 1 : i32
    %0 = arith.addi %arg1, %c1_i32 : i32
    %c2_i32 = arith.constant 2 : i32
    %1 = arith.muli %0, %c2_i32 : i32
    %c1_i32_0 = arith.constant 1 : i32
    %2 = arith.minsi %1, %c1_i32_0 : i32
    %c0_i32 = arith.constant 0 : i32
    %c0_i32_1 = arith.constant 0 : i32
    return %arg0, %c0_i32, %2 : i32, i32, i32
  }
  func.func @transform_3(%arg0: i32, %arg1: i32) -> (i32, i32, i32) {
    %c0_i32 = arith.constant 0 : i32
    %c0_i32_0 = arith.constant 0 : i32
    %c0_i32_1 = arith.constant 0 : i32
    %c0_i32_2 = arith.constant 0 : i32
    return %c0_i32, %c0_i32_0, %c0_i32_1 : i32, i32, i32
  }
  func.func @transform_4(%arg0: i32, %arg1: i32) -> (i32, i32) {
    %c0_i32 = arith.constant 0 : i32
    %c0_i32_0 = arith.constant 0 : i32
    %c0_i32_1 = arith.constant 0 : i32
    return %c0_i32, %c0_i32_0 : i32, i32
  }
  func.func @transform_5(%arg0: i32, %arg1: i32) -> (i32, i32, i32) {
    %c0_i32 = arith.constant 0 : i32
    %c0_i32_0 = arith.constant 0 : i32
    return %arg0, %c0_i32, %arg1 : i32, i32, i32
  }
}

</mosaic_0001>

<llo_original>
// kernel: tpu_custom_call.1
$region0: #{tpu_custom_call.1}
  #allocation0 [shape = 'u32[]', space=smem, size = 0x4, offset = 0x4, fixed_abs, tag = 'smem constant byte address 0x4 - core index']
  #allocation1 [shape = 'u32[72,128]{1,0:T(1,128)}', space=vmem, size = 0x9000, scoped, tag = 'internal scratch']
  #allocation2 [shape = 'bf16[4,512]{1,0:T(4,128)(2,1)}', space=vmem, size = 0x1000, scoped, tag = 'scratch operand']
  %s0 = inlined_call_operand.vmem [shape: bf16[2,4,256], index: 0, kind: input, shape index: {}]
  %s1 = inlined_call_operand.vmem [shape: bf16[2,4,256], index: 1, kind: input, shape index: {}]
  %s2 = inlined_call_operand.vmem [shape: bf16[2,4,256], index: 2, kind: input, shape index: {}]
  %s3 = inlined_call_operand.vmem [shape: bf16[9,8,4], index: 3, kind: input, shape index: {}]
  %s4 = inlined_call_operand.vmem [shape: f32[8,1], index: 4, kind: input, shape index: {}]
  %s5 = inlined_call_operand.hbm [shape: f32[2,8,256], index: 5, kind: output, shape index: {}]
  %s6 = sld [smem:[#allocation0]]
  $region69: #{tpu_custom_call.1} parent=0
    _
  %s8 = ssub.s32 1, %s6
  %s9 = scalar_select 0, %s8, %s6
  $region1: #{tpu_custom_call.1} parent=0
    #allocation3 [shape = 'u8[16384]{0}', space=vmem, size = 0x4000, scoped, tag = 'output window, operand 0']
    #allocation4 [shape = 's32[2]{0}', space=sflag, size = 0x8, scoped, tag = 'scoped memory for tpu_custom_call.1']
    %10 = vsyncpa [#allocation4], 0
    %s11 = scalar_lea.sflag [#allocation4], 1
    %12 = vsyncpa %s11, 0
    loop: start=0, step=1, limit=4
    $region2: #{tpu_custom_call.1} parent=1 // loop_pre_header
      _
    $region3: #{tpu_custom_call.1} parent=1 // loop_header
      %s14 = sphi 0, %s18
      %p15 = scmp.ge.s32.totalorder %s14, 4
      %s21 = sphi 0, %s33
      %s22 = sphi 0, %s29
      %s23 = sphi 0, %s21
      %s24 = sphi 0, %s22
      %s25 = sphi 0, %s23
      %s26 = sphi 0, %s24
      %s46 = sphi 0, %s48
      %s49 = sphi 0, %s46
      %s50 = sphi 0, %s49
      %s66 = sphi 0, %s50
      %s74 = sphi 0, %s76
      %s77 = sphi 0, %s74
      %s78 = sphi 0, %s77
      %s94 = sphi 0, %s78
      %s110 = sphi 0, %s112
      %s113 = sphi 0, %s110
      %s114 = sphi 0, %s113
      %s130 = sphi 0, %s114
      %s134 = sphi 0, %s134
      %s136 = sphi 0, %s134
      %s137 = sphi 0, %s136
      %s151 = sphi 0, %s137
      %s155 = sphi 0, %s155
      %s157 = sphi 0, %s155
      %s158 = sphi 0, %s157
      %s172 = sphi 0, %s158
      %s180 = sphi 0, %s182
      %s183 = sphi 0, %s180
      %s184 = sphi 0, %s183
      %s200 = sphi 0, %s184
    $region4: #{tpu_custom_call.1} parent=1 // loop_header_branch
      %17 = sbr.rel (%p15) target = $region8
    $region5: #{tpu_custom_call.1} parent=1 // loop_body
      %s19 = ssub.s32 %s14, 1
      %s20 = ssub.s32 %s14, 2
      %s27 = sadd.s32 1, %s22
      %p28 = scmp.ge.s32.totalorder %s27, 1
      %s29 = scalar_select %p28, 0, %s27
      %s30 = sadd.s32 1, %s21
      %s31 = scalar_select %p28, %s30, %s21
      %p32 = scmp.ge.s32.totalorder %s31, 2
      %s33 = scalar_select %p32, 0, %s31
      %s34 = smul.u32 %s22, 2
      %s35 = ssub.s32 %s34, 1
      %p36 = scmp.gt.s32.totalorder %s35, 0
      %s37 = scalar_select %p36, %s35, 0
      %s38 = smul.u32 %s29, 2
      %s39 = ssub.s32 %s38, 1
      %p40 = scmp.gt.s32.totalorder %s39, 0
      %s41 = scalar_select %p40, %s39, 0
      %s42 = ssub.s32 %s21, %s33
      %s43 = ssub.s32 %s37, %s41
      %s44 = sor.u32 %s42, %s43
      %p45 = scmp.eq.s32.totalorder %s44, 0
      %s47 = sadd.s32 %s46, 1
      %s48 = scalar_select %p45, %s46, %s47
      %p51 = pneg %p45
      %p52 = scmp.eq.s32.totalorder %s14, 1
      %p53 = por %p51, %p52
      %p54 = scmp.ne.s32.totalorder %s46, %s49
      %p55 = scmp.eq.s32.totalorder %s14, 0
      %p56 = por %p54, %p55
      %p57 = scmp.ne.s32.totalorder %s46, %s49
      %p58 = scmp.eq.s32.totalorder %s19, 1
      %p59 = por %p57, %p58
      %p60 = scmp.ne.s32.totalorder %s49, %s50
      %p61 = scmp.eq.s32.totalorder %s19, 0
      %p62 = por %p60, %p61
      %p63 = scmp.ne.s32.totalorder %s49, %s50
      %p64 = scmp.eq.s32.totalorder %s20, 1
      %p65 = por %p63, %p64
      %p67 = scmp.ne.s32.totalorder %s50, %s66
      %p68 = scmp.eq.s32.totalorder %s20, 0
      %p69 = por %p67, %p68
      %s70 = ssub.s32 %s21, %s33
      %s71 = ssub.s32 %s22, %s29
      %s72 = sor.u32 %s70, %s71
      %p73 = scmp.eq.s32.totalorder %s72, 0
      %s75 = sadd.s32 %s74, 1
      %s76 = scalar_select %p73, %s74, %s75
      %p79 = pneg %p73
      %p80 = scmp.eq.s32.totalorder %s14, 1
      %p81 = por %p79, %p80
      %p82 = scmp.ne.s32.totalorder %s74, %s77
      %p83 = scmp.eq.s32.totalorder %s14, 0
      %p84 = por %p82, %p83
      %p85 = scmp.ne.s32.totalorder %s74, %s77
      %p86 = scmp.eq.s32.totalorder %s19, 1
      %p87 = por %p85, %p86
      %p88 = scmp.ne.s32.totalorder %s77, %s78
      %p89 = scmp.eq.s32.totalorder %s19, 0
      %p90 = por %p88, %p89
      %p91 = scmp.ne.s32.totalorder %s77, %s78
      %p92 = scmp.eq.s32.totalorder %s20, 1
      %p93 = por %p91, %p92
      %p95 = scmp.ne.s32.totalorder %s78, %s94
      %p96 = scmp.eq.s32.totalorder %s20, 0
      %p97 = por %p95, %p96
      %s98 = sadd.s32 %s22, 1
      %s99 = smul.u32 %s98, 2
      %p100 = scmp.lt.s32.totalorder %s99, 1
      %s101 = scalar_select %p100, %s99, 1
      %s102 = sadd.s32 %s29, 1
      %s103 = smul.u32 %s102, 2
      %p104 = scmp.lt.s32.totalorder %s103, 1
      %s105 = scalar_select %p104, %s103, 1
      %s106 = ssub.s32 %s21, %s33
      %s107 = ssub.s32 %s101, %s105
      %s108 = sor.u32 %s106, %s107
      %p109 = scmp.eq.s32.totalorder %s108, 0
      %s111 = sadd.s32 %s110, 1
      %s112 = scalar_select %p109, %s110, %s111
      %p115 = pneg %p109
      %p116 = scmp.eq.s32.totalorder %s14, 1
      %p117 = por %p115, %p116
      %p118 = scmp.ne.s32.totalorder %s110, %s113
      %p119 = scmp.eq.s32.totalorder %s14, 0
      %p120 = por %p118, %p119
      %p121 = scmp.ne.s32.totalorder %s110, %s113
      %p122 = scmp.eq.s32.totalorder %s19, 1
      %p123 = por %p121, %p122
      %p124 = scmp.ne.s32.totalorder %s113, %s114
      %p125 = scmp.eq.s32.totalorder %s19, 0
      %p126 = por %p124, %p125
      %p127 = scmp.ne.s32.totalorder %s113, %s114
      %p128 = scmp.eq.s32.totalorder %s20, 1
      %p129 = por %p127, %p128
      %p131 = scmp.ne.s32.totalorder %s114, %s130
      %p132 = scmp.eq.s32.totalorder %s20, 0
      %p133 = por %p131, %p132
      %s135 = sadd.s32 %s134, 1
      %p138 = scmp.eq.s32.totalorder %s14, 1
      %p139 = scmp.ne.s32.totalorder %s134, %s136
      %p140 = scmp.eq.s32.totalorder %s14, 0
      %p141 = por %p139, %p140
      %p142 = scmp.ne.s32.totalorder %s134, %s136
      %p143 = scmp.eq.s32.totalorder %s19, 1
      %p144 = por %p142, %p143
      %p145 = scmp.ne.s32.totalorder %s136, %s137
      %p146 = scmp.eq.s32.totalorder %s19, 0
      %p147 = por %p145, %p146
      %p148 = scmp.ne.s32.totalorder %s136, %s137
      %p149 = scmp.eq.s32.totalorder %s20, 1
      %p150 = por %p148, %p149
      %p152 = scmp.ne.s32.totalorder %s137, %s151
      %p153 = scmp.eq.s32.totalorder %s20, 0
      %p154 = por %p152, %p153
      %s156 = sadd.s32 %s155, 1
      %p159 = scmp.eq.s32.totalorder %s14, 1
      %p160 = scmp.ne.s32.totalorder %s155, %s157
      %p161 = scmp.eq.s32.totalorder %s14, 0
      %p162 = por %p160, %p161
      %p163 = scmp.ne.s32.totalorder %s155, %s157
      %p164 = scmp.eq.s32.totalorder %s19, 1
      %p165 = por %p163, %p164
      %p166 = scmp.ne.s32.totalorder %s157, %s158
      %p167 = scmp.eq.s32.totalorder %s19, 0
      %p168 = por %p166, %p167
      %p169 = scmp.ne.s32.totalorder %s157, %s158
      %p170 = scmp.eq.s32.totalorder %s20, 1
      %p171 = por %p169, %p170
      %p173 = scmp.ne.s32.totalorder %s158, %s172
      %p174 = scmp.eq.s32.totalorder %s20, 0
      %p175 = por %p173, %p174
      %s176 = ssub.s32 %s21, %s33
      %s177 = ssub.s32 %s22, %s29
      %s178 = sor.u32 %s176, %s177
      %p179 = scmp.eq.s32.totalorder %s178, 0
      %s181 = sadd.s32 %s180, 1
      %s182 = scalar_select %p179, %s180, %s181
      %p185 = pneg %p179
      %p186 = scmp.eq.s32.totalorder %s14, 1
      %p187 = por %p185, %p186
      %p188 = scmp.ne.s32.totalorder %s180, %s183
      %p189 = scmp.eq.s32.totalorder %s14, 0
      %p190 = por %p188, %p189
      %p191 = scmp.ne.s32.totalorder %s180, %s183
      %p192 = scmp.eq.s32.totalorder %s19, 1
      %p193 = por %p191, %p192
      %p194 = scmp.ne.s32.totalorder %s183, %s184
      %p195 = scmp.eq.s32.totalorder %s19, 0
      %p196 = por %p194, %p195
      %p197 = scmp.ne.s32.totalorder %s183, %s184
      %p198 = scmp.eq.s32.totalorder %s20, 1
      %p199 = por %p197, %p198
      %p201 = scmp.ne.s32.totalorder %s184, %s200
      %p202 = scmp.eq.s32.totalorder %s20, 0
      %p203 = por %p201, %p202
      %p204 = scmp.le.s32.totalorder 1, %s14
      %p205 = scmp.lt.s32.totalorder %s14, 3
      %p206 = pnand %p204, %p205
      %p207 = pneg %p206
      // Predicated region
      $region9: #{tpu_custom_call.1} parent=5 // pred_check
        _
      $region10: #{tpu_custom_call.1} parent=5 // pred_check_branch
        %209 = sbr.rel (%p206) target = $region12
      $region11: #{tpu_custom_call.1} parent=5 // pred_region
        %s210 = ssub.s32 %s14, 1
        // Predicated region
        $region13: #{tpu_custom_call.1} parent=11 // pred_check
          %p211 = pneg %p147
        $region14: #{tpu_custom_call.1} parent=11 // pred_check_branch
          %213 = sbr.rel (%p211) target = $region16
        $region15: #{tpu_custom_call.1} parent=11 // pred_region
          _
        $region16: #{tpu_custom_call.1} parent=11 // pred_fallthru
          _
        // Predicated region
        $region17: #{tpu_custom_call.1} parent=11 // pred_check
          %p214 = pneg %p168
        $region18: #{tpu_custom_call.1} parent=11 // pred_check_branch
          %216 = sbr.rel (%p214) target = $region20
        $region19: #{tpu_custom_call.1} parent=11 // pred_region
          _
        $region20: #{tpu_custom_call.1} parent=11 // pred_fallthru
          _
      $region12: #{tpu_custom_call.1} parent=5 // pred_fallthru
        _
      %p217 = scmp.lt.s32.totalorder %s14, 2
      // Predicated region
      $region21: #{tpu_custom_call.1} parent=5 // pred_check
        %p218 = pneg %p217
      $region22: #{tpu_custom_call.1} parent=5 // pred_check_branch
        %220 = sbr.rel (%p218) target = $region24
      $region23: #{tpu_custom_call.1} parent=5 // pred_region
        // Predicated region
        $region25: #{tpu_custom_call.1} parent=23 // pred_check
          %p221 = pneg %p56
        $region26: #{tpu_custom_call.1} parent=23 // pred_check_branch
          %223 = sbr.rel (%p221) target = $region28
        $region27: #{tpu_custom_call.1} parent=23 // pred_region
          %s224 = smul.u32 %s22, 2
          %s225 = ssub.s32 %s224, 1
          %p226 = scmp.gt.s32.totalorder %s225, 0
          %s227 = scalar_select %p226, %s225, 0
          %p228 = scmp.lt.s32.totalorder %s21, 1
          %s229 = scalar_select %p228, %s21, 1
          %p230 = scmp.lt.s32.totalorder %s227, 1
          %s231 = scalar_select %p230, %s227, 1
          %s232 = smul.addr %s229, 2
          %s233 = sadd.s32 %s231, %s232
          %s234 = smul.addr %s233, 2
          %s235 = scalar_lea.vmem %s0, %s234
          %s236 = smul.u32 %s22, 2
          %s237 = ssub.s32 %s236, 1
          %p238 = scmp.gt.s32.totalorder %s237, 0
          %s239 = scalar_select %p238, %s237, 0
        $region28: #{tpu_custom_call.1} parent=23 // pred_fallthru
          _
        // Predicated region
        $region29: #{tpu_custom_call.1} parent=23 // pred_check
          %p240 = pneg %p84
        $region30: #{tpu_custom_call.1} parent=23 // pred_check_branch
          %242 = sbr.rel (%p240) target = $region32
        $region31: #{tpu_custom_call.1} parent=23 // pred_region
          %s243 = smul.u32 2, %s22
          %p244 = scmp.lt.s32.totalorder %s21, 1
          %s245 = scalar_select %p244, %s21, 1
          %p246 = scmp.lt.s32.totalorder %s243, 1
          %s247 = scalar_select %p246, %s243, 1
          %s248 = smul.addr %s245, 2
          %s249 = sadd.s32 %s247, %s248
          %s250 = smul.addr %s249, 2
          %s251 = scalar_lea.vmem %s1, %s250
          %s252 = smul.u32 2, %s22
        $region32: #{tpu_custom_call.1} parent=23 // pred_fallthru
          _
        // Predicated region
        $region33: #{tpu_custom_call.1} parent=23 // pred_check
          %p253 = pneg %p120
        $region34: #{tpu_custom_call.1} parent=23 // pred_check_branch
          %255 = sbr.rel (%p253) target = $region36
        $region35: #{tpu_custom_call.1} parent=23 // pred_region
          %s256 = sadd.s32 %s22, 1
          %s257 = smul.u32 %s256, 2
          %p258 = scmp.lt.s32.totalorder %s257, 1
          %s259 = scalar_select %p258, %s257, 1
          %p260 = scmp.lt.s32.totalorder %s21, 1
          %s261 = scalar_select %p260, %s21, 1
          %p262 = scmp.lt.s32.totalorder %s259, 1
          %s263 = scalar_select %p262, %s259, 1
          %s264 = smul.addr %s261, 2
          %s265 = sadd.s32 %s263, %s264
          %s266 = smul.addr %s265, 2
          %s267 = scalar_lea.vmem %s2, %s266
          %s268 = sadd.s32 %s22, 1
          %s269 = smul.u32 %s268, 2
          %p270 = scmp.lt.s32.totalorder %s269, 1
          %s271 = scalar_select %p270, %s269, 1
        $region36: #{tpu_custom_call.1} parent=23 // pred_fallthru
          _
      $region24: #{tpu_custom_call.1} parent=5 // pred_fallthru
        _
      %p272 = scmp.le.s32.totalorder 1, %s14
      %p273 = scmp.lt.s32.totalorder %s14, 3
      %p274 = pnand %p272, %p273
      %p275 = pneg %p274
      // Predicated region
      $region37: #{tpu_custom_call.1} parent=5 // pred_check
        _
      $region38: #{tpu_custom_call.1} parent=5 // pred_check_branch
        %277 = sbr.rel (%p274) target = $region40
      $region39: #{tpu_custom_call.1} parent=5 // pred_region
        %s278 = ssub.s32 %s14, 1
        %s279 = smul.u32 %s24, 2
        %s280 = ssub.s32 %s279, 1
        %p281 = scmp.gt.s32.totalorder %s280, 0
        %s282 = scalar_select %p281, %s280, 0
        %p283 = scmp.lt.s32.totalorder %s23, 1
        %s284 = scalar_select %p283, %s23, 1
        %p285 = scmp.lt.s32.totalorder %s282, 1
        %s286 = scalar_select %p285, %s282, 1
        %s287 = smul.addr %s284, 2
        %s288 = sadd.s32 %s286, %s287
        %s289 = smul.addr %s288, 2
        %s290 = scalar_lea.vmem %s0, %s289
        %p291 = pneg %p62
        %p292 = pneg %p59
        %s293 = smul.u32 2, %s24
        %p294 = scmp.lt.s32.totalorder %s23, 1
        %s295 = scalar_select %p294, %s23, 1
        %p296 = scmp.lt.s32.totalorder %s293, 1
        %s297 = scalar_select %p296, %s293, 1
        %s298 = smul.addr %s295, 2
        %s299 = sadd.s32 %s297, %s298
        %s300 = smul.addr %s299, 2
        %s301 = scalar_lea.vmem %s1, %s300
        %p302 = pneg %p90
        %p303 = pneg %p87
        %s304 = sadd.s32 %s24, 1
        %s305 = smul.u32 %s304, 2
        %p306 = scmp.lt.s32.totalorder %s305, 1
        %s307 = scalar_select %p306, %s305, 1
        %p308 = scmp.lt.s32.totalorder %s23, 1
        %s309 = scalar_select %p308, %s23, 1
        %p310 = scmp.lt.s32.totalorder %s307, 1
        %s311 = scalar_select %p310, %s307, 1
        %s312 = smul.addr %s309, 2
        %s313 = sadd.s32 %s311, %s312
        %s314 = smul.addr %s313, 2
        %s315 = scalar_lea.vmem %s2, %s314
        %p316 = pneg %p126
        %p317 = pneg %p123
        %p318 = pneg %p147
        %p319 = pneg %p144
        %p320 = pneg %p168
        %p321 = pneg %p165
        %p322 = pneg %p196
        %p323 = pneg %p193
        %s324 = sand.u32 %s183, 1
        %s325 = scalar_lea.sflag [#allocation4], %s324
        %s326 = sand.u32 %s183, 1
        %s327 = smul.addr %s326, 16
        %s328 = scalar_lea.vmem [#allocation3], %s327
        %s329 = smul.u32 %s24, 2
        %s330 = ssub.s32 %s329, 1
        %p331 = scmp.gt.s32.totalorder %s330, 0
        %s332 = scalar_select %p331, %s330, 0
        %p333 = scmp.lt.s32.totalorder %s23, 1
        %s334 = scalar_select %p333, %s23, 1
        %p335 = scmp.lt.s32.totalorder %s332, 1
        %s336 = scalar_select %p335, %s332, 1
        %s337 = smul.addr %s334, 2
        %s338 = sadd.s32 %s336, %s337
        %s339 = smul.addr %s338, 2
        %s340 = scalar_lea.vmem %s0, %s339
        %s341 = smul.u32 %s24, 2
        %s342 = ssub.s32 %s341, 1
        %p343 = scmp.gt.s32.totalorder %s342, 0
        %s344 = scalar_select %p343, %s342, 0
        %s345 = smul.u32 2, %s24
        %p346 = scmp.lt.s32.totalorder %s23, 1
        %s347 = scalar_select %p346, %s23, 1
        %p348 = scmp.lt.s32.totalorder %s345, 1
        %s349 = scalar_select %p348, %s345, 1
        %s350 = smul.addr %s347, 2
        %s351 = sadd.s32 %s349, %s350
        %s352 = smul.addr %s351, 2
        %s353 = scalar_lea.vmem %s1, %s352
        %s354 = smul.u32 2, %s24
        %s355 = sadd.s32 %s24, 1
        %s356 = smul.u32 %s355, 2
        %p357 = scmp.lt.s32.totalorder %s356, 1
        %s358 = scalar_select %p357, %s356, 1
        %p359 = scmp.lt.s32.totalorder %s23, 1
        %s360 = scalar_select %p359, %s23, 1
        %p361 = scmp.lt.s32.totalorder %s358, 1
        %s362 = scalar_select %p361, %s358, 1
        %s363 = smul.addr %s360, 2
        %s364 = sadd.s32 %s362, %s363
        %s365 = smul.addr %s364, 2
        %s366 = scalar_lea.vmem %s2, %s365
        %s367 = sadd.s32 %s24, 1
        %s368 = smul.u32 %s367, 2
        %p369 = scmp.lt.s32.totalorder %s368, 1
        %s370 = scalar_select %p369, %s368, 1
        %s371 = smul.u32 2, %s24
        %v373 = vld [vmem:[%s353] sm:$0xf]
        %374 = vst [vmem:[#allocation2 + $0x2] sm:$0xf] %v373
        %p375 = scmp.gt.s32.totalorder %s24, 0
        // Predicated region
        $region41: #{tpu_custom_call.1} parent=39 // pred_check
          %p376 = pneg %p375
        $region42: #{tpu_custom_call.1} parent=39 // pred_check_branch
          %378 = sbr.rel (%p376) target = $region44
        $region43: #{tpu_custom_call.1} parent=39 // pred_region
          %v379 = vld [vmem:[%s340] sm:$0x3]
          %vm380 = vcmask 1042296
          %381 = vst.msk [vmem:[#allocation2] sm:$0x3] %vm380, %v379
        $region44: #{tpu_custom_call.1} parent=39 // pred_fallthru
          _
        %p382 = scmp.eq.s32.totalorder %s24, 0
        // Predicated region
        $region45: #{tpu_custom_call.1} parent=39 // pred_check
          %p383 = pneg %p382
        $region46: #{tpu_custom_call.1} parent=39 // pred_check_branch
          %385 = sbr.rel (%p383) target = $region48
        $region47: #{tpu_custom_call.1} parent=39 // pred_region
          %vm386 = vcmask 1042296
          %387 = vst.msk [vmem:[#allocation2] sm:$0x3] %vm386, 0
        $region48: #{tpu_custom_call.1} parent=39 // pred_fallthru
          _
        %p388 = scmp.lt.s32.totalorder %s24, 0
        // Predicated region
        $region49: #{tpu_custom_call.1} parent=39 // pred_check
          %p389 = pneg %p388
        $region50: #{tpu_custom_call.1} parent=39 // pred_check_branch
          %391 = sbr.rel (%p389) target = $region52
        $region51: #{tpu_custom_call.1} parent=39 // pred_region
          %v392 = vld [vmem:[%s366] sm:$0x3]
          %vm393 = vcmask 132096
          %394 = vst.msk [vmem:[#allocation2 + $0x6] sm:$0x3] %vm393, %v392
        $region52: #{tpu_custom_call.1} parent=39 // pred_fallthru
          _
        // Predicated region
        $region53: #{tpu_custom_call.1} parent=39 // pred_check
          %p395 = pneg %p382
        $region54: #{tpu_custom_call.1} parent=39 // pred_check_branch
          %397 = sbr.rel (%p395) target = $region56
        $region55: #{tpu_custom_call.1} parent=39 // pred_region
          %vm398 = vcmask 132096
          %399 = vst.msk [vmem:[#allocation2 + $0x6] sm:$0x3] %vm398, 0
        $region56: #{tpu_custom_call.1} parent=39 // pred_fallthru
          _
        %v400 = vlaneseq
        %v401 = vand.u32 %v400, 127
        %v402 = vadd.s32 %v401, 128
        %vm403 = vcmp.lt.s32.totalorder %v401, 0
        %v404 = vsub.s32 0, %v401
        %v405 = vsel %vm403, %v404, %v401
        %v406 = vshrl.u32 %v405, 4
        %v407 = vand.u32 %v405, 15
        %v408 = vsub.s32 0, %v407
        %v409 = vsel %vm403, %v408, %v407
        %vm410 = vcmp.lt.s32.totalorder %v402, 0
        %v411 = vsub.s32 0, %v402
        %v412 = vsel %vm410, %v411, %v402
        %v413 = vshrl.u32 %v412, 4
        %v414 = vand.u32 %v412, 15
        %v415 = vsub.s32 0, %v414
        %v416 = vsel %vm410, %v415, %v414
        %vm417 = vcmp.ne.s32.totalorder %v409, 0
        %vm418 = vcmp.ne.s32.totalorder %v416, 0
        %vm419 = vcmp.lt.s32.totalorder %v409, 0
        %vm420 = vcmp.lt.s32.totalorder %v416, 0
        %vm421 = vmand %vm419, %vm417
        %vm422 = vmand %vm420, %vm418
        %v423 = vadd.s32 %v409, 16
        %v424 = vadd.s32 %v416, 16
        %v425 = vsel %vm421, %v423, %v409
        %v426 = vsel %vm422, %v424, %v416
        %vm427 = vcmp.ge.s32.totalorder %v425, 1
        %vm428 = vcmp.ge.s32.totalorder %v426, 1
        %vm429 = vcmp.lt.s32.totalorder %v425, 17
        %vm430 = vcmp.lt.s32.totalorder %v426, 17
        %vm431 = vmand %vm427, %vm429
        %vm432 = vmand %vm428, %vm430
        %v433 = vsel %vm431, 1, 0
        %v434 = vsel %vm432, 1, 0
        %v435 = vcvt.s32.f32 %v433
        %v436 = vcvt.s32.f32 %v434
        %v437 = vpack.c.bf16 %v436, %v435
        %vm438 = vcmp.ge.s32.totalorder %v425, 4294967295
        %vm439 = vcmp.ge.s32.totalorder %v426, 4294967295
        %vm440 = vcmp.lt.s32.totalorder %v425, 15
        %vm441 = vcmp.lt.s32.totalorder %v426, 15
        %vm442 = vmand %vm438, %vm440
        %vm443 = vmand %vm439, %vm441
        %v444 = vsel %vm442, 1, 0
        %v445 = vsel %vm443, 1, 0
        %v446 = vcvt.s32.f32 %v444
        %v447 = vcvt.s32.f32 %v445
        %v448 = vpack.c.bf16 %v447, %v446
        %v449 = vld [vmem:[#allocation2] sm:$0x3f]
        %v450 = vunpack.c.l.bf16 %v449
        %v451 = vunpack.c.h.bf16 %v449
        %v452 = vunpack.c.l.bf16 %v437
        %v453 = vunpack.c.h.bf16 %v437
        %v456 = vrot.slane %v453, 4
        %vm457 = vcmask 1043456
        %v458 = vsel %vm457, %v452, %v456
        %459 = vrot.lane.b32.xlu0 %v458, 111
        %v460 = vpop.permute.xlu0 %459
        %v461 = vrot.slane %v460, 4
        %vm462 = vcmask 908288
        %v463 = vsel %vm462, %v461, %v460
        %v466 = vmul.f32 %v450, %v463
        %v467 = vmul.f32 %v451, %v461
        %470 = vst [vmem:[#allocation1] ss:$2 sm:$0xff] %v466
        %s471 = scalar_lea.vmem [#allocation1], 16
        %472 = vst [vmem:[%s471] ss:$2 sm:$0xff] %v467
        %v473 = vld.sshfl [vmem:[#allocation1] sm:$0xff pattern:$0x75316420]
        %v474 = vld.sshfl [vmem:[#allocation1 + $0x8] sm:$0xff pattern:$0x75316420]
        %v475 = vld.sshfl [vmem:[#allocation1 + $0x10] sm:$0xff pattern:$0x75316420]
        %v479 = vpack.c.bf16 %v473, %v473
        %v480 = vpack.c.bf16 %v474, %v474
        %v481 = vpack.c.bf16 %v475, %v475
        %v482 = vld [vmem:[%s3] sm:$0xf]
        %v483 = vld [vmem:[#allocation2] sm:$0x3f]
        %s484 = scalar_lea.vmem %s3, 4
        %v485 = vld [vmem:[%s484] sm:$0xf]
        %487 = vst [vmem:[#allocation1] ss:$4 sm:$0xff] %v483
        %v488 = vld.sshfl [vmem:[#allocation1] sm:$0xff pattern:$0x73625140]
        %v490 = vld.sshfl [vmem:[#allocation1 + $0x8] sm:$0xff pattern:$0x73625140]
        %v492 = vld.sshfl [vmem:[#allocation1 + $0x10] sm:$0xff pattern:$0x73625140]
        %494 = vrot.lane.b32.xlu0 %v488, 16
        %v495 = vpop.permute.xlu0 %494
        %496 = vrot.lane.b32.xlu0 %v490, 16
        %v497 = vpop.permute.xlu0 %496
        %498 = vrot.lane.b32.xlu0 %v492, 16
        %v499 = vpop.permute.xlu0 %498
        %vm500 = vcmask 130048
        %v501 = vsel %vm500, %v495, %v497
        %v502 = vsel %vm500, %v497, %v499
        %vm503 = vcmask 31744
        %v505 = vsel %vm503, %v485, 0
        %vm507 = vcmask 1041408
        %v509 = vsel %vm507, %v501, 0
        %v512 = vsel %vm507, %v502, 0
        %514 = vmatpush.bf16.msra.mxu0 0
        %515 = vmatpush.bf16.msra.mxu0 0
        %516 = vmatpush.bf16.msra.mxu0 0
        %517 = vmatpush.bf16.msra.mxu0 0
        %518 = vmatpush.bf16.msra.mxu0 0
        %519 = vmatpush.bf16.msra.mxu0 0
        %520 = vmatpush.bf16.msra.mxu0 0
        %521 = vmatpush.bf16.msra.mxu0 %v509
        %522 = vmatmul.bf16.gmra.mxu0 %v505
        %v523 = vpop.f32.mrf.mxu0
        %v524 = vadd.f32 0.0, %v523
        %v525 = vpop.f32.mrf.mxu0
        %526 = vdwg.mxu0
        %527 = vmatpush.bf16.msra.mxu0 0
        %528 = vmatpush.bf16.msra.mxu0 0
        %529 = vmatpush.bf16.msra.mxu0 0
        %530 = vmatpush.bf16.msra.mxu0 0
        %531 = vmatpush.bf16.msra.mxu0 0
        %532 = vmatpush.bf16.msra.mxu0 0
        %533 = vmatpush.bf16.msra.mxu0 0
        %534 = vmatpush.bf16.msra.mxu0 %v512
        %535 = vmatmul.bf16.gmra.mxu0 %v505
        %v536 = vpop.f32.mrf.mxu0
        %v537 = vadd.f32 0.0, %v536
        %v538 = vpop.f32.mrf.mxu0
        %539 = vdwg.mxu0
        %543 = vrot.lane.b32.xlu0 %v479, 17
        %v544 = vpop.permute.xlu0 %543
        %545 = vrot.lane.b32.xlu0 %v480, 17
        %v546 = vpop.permute.xlu0 %545
        %547 = vrot.lane.b32.xlu0 %v481, 17
        %v548 = vpop.permute.xlu0 %547
        %vm549 = vcmask 138240
        %v550 = vsel %vm549, %v544, %v546
        %v551 = vsel %vm549, %v546, %v548
        %v553 = vsel %vm503, %v482, 0
        %v556 = vsel %vm507, %v550, 0
        %v559 = vsel %vm507, %v551, 0
        %561 = vmatpush.bf16.msra.mxu0 0
        %562 = vmatpush.bf16.msra.mxu0 0
        %563 = vmatpush.bf16.msra.mxu0 0
        %564 = vmatpush.bf16.msra.mxu0 0
        %565 = vmatpush.bf16.msra.mxu0 0
        %566 = vmatpush.bf16.msra.mxu0 0
        %567 = vmatpush.bf16.msra.mxu0 0
        %568 = vmatpush.bf16.msra.mxu0 %v556
        %569 = vmatmul.bf16.gmra.mxu0 %v553
        %v570 = vpop.f32.mrf.mxu0
        %v571 = vadd.f32 %v524, %v570
        %v572 = vpop.f32.mrf.mxu0
        %573 = vdwg.mxu0
        %574 = vmatpush.bf16.msra.mxu0 0
        %575 = vmatpush.bf16.msra.mxu0 0
        %576 = vmatpush.bf16.msra.mxu0 0
        %577 = vmatpush.bf16.msra.mxu0 0
        %578 = vmatpush.bf16.msra.mxu0 0
        %579 = vmatpush.bf16.msra.mxu0 0
        %580 = vmatpush.bf16.msra.mxu0 0
        %581 = vmatpush.bf16.msra.mxu0 %v559
        %582 = vmatmul.bf16.gmra.mxu0 %v553
        %v583 = vpop.f32.mrf.mxu0
        %v584 = vadd.f32 %v537, %v583
        %v585 = vpop.f32.mrf.mxu0
        %586 = vdwg.mxu0
        %v587 = vld [vmem:[#allocation2] sm:$0x3f]
        %v588 = vunpack.c.l.bf16 %v587
        %v589 = vunpack.c.h.bf16 %v587
        %v590 = vunpack.c.l.bf16 %v448
        %v591 = vunpack.c.h.bf16 %v448
        %v594 = vrot.slane %v591, 4
        %v595 = vsel %vm457, %v590, %v594
        %596 = vrot.lane.b32.xlu0 %v595, 113
        %v597 = vpop.permute.xlu0 %596
        %v598 = vrot.slane %v597, 4
        %vm599 = vcmask 924672
        %v600 = vsel %vm599, %v598, %v597
        %v603 = vmul.f32 %v588, %v600
        %v604 = vmul.f32 %v589, %v598
        %607 = vst [vmem:[#allocation1] ss:$2 sm:$0xff] %v603
        %s608 = scalar_lea.vmem [#allocation1], 16
        %609 = vst [vmem:[%s608] ss:$2 sm:$0xff] %v604
        %v610 = vld.sshfl [vmem:[#allocation1] sm:$0xff pattern:$0x75316420]
        %v611 = vld.sshfl [vmem:[#allocation1 + $0x8] sm:$0xff pattern:$0x75316420]
        %v612 = vld.sshfl [vmem:[#allocation1 + $0x10] sm:$0xff pattern:$0x75316420]
        %v616 = vpack.c.bf16 %v610, %v610
        %v617 = vpack.c.bf16 %v611, %v611
        %v618 = vpack.c.bf16 %v612, %v612
        %s619 = scalar_lea.vmem %s3, 8
        %v620 = vld [vmem:[%s619] sm:$0xf]
        %624 = vrot.lane.b32.xlu0 %v616, 15
        %v625 = vpop.permute.xlu0 %624
        %626 = vrot.lane.b32.xlu0 %v617, 15
        %v627 = vpop.permute.xlu0 %626
        %628 = vrot.lane.b32.xlu0 %v618, 15
        %v629 = vpop.permute.xlu0 %628
        %vm630 = vcmask 121856
        %v631 = vsel %vm630, %v625, %v627
        %v632 = vsel %vm630, %v627, %v629
        %v634 = vsel %vm503, %v620, 0
        %v637 = vsel %vm507, %v631, 0
        %v640 = vsel %vm507, %v632, 0
        %642 = vmatpush.bf16.msra.mxu0 0
        %643 = vmatpush.bf16.msra.mxu0 0
        %644 = vmatpush.bf16.msra.mxu0 0
        %645 = vmatpush.bf16.msra.mxu0 0
        %646 = vmatpush.bf16.msra.mxu0 0
        %647 = vmatpush.bf16.msra.mxu0 0
        %648 = vmatpush.bf16.msra.mxu0 0
        %649 = vmatpush.bf16.msra.mxu0 %v637
        %650 = vmatmul.bf16.gmra.mxu0 %v634
        %v651 = vpop.f32.mrf.mxu0
        %v652 = vadd.f32 0.0, %v651
        %v653 = vpop.f32.mrf.mxu0
        %654 = vdwg.mxu0
        %655 = vmatpush.bf16.msra.mxu0 0
        %656 = vmatpush.bf16.msra.mxu0 0
        %657 = vmatpush.bf16.msra.mxu0 0
        %658 = vmatpush.bf16.msra.mxu0 0
        %659 = vmatpush.bf16.msra.mxu0 0
        %660 = vmatpush.bf16.msra.mxu0 0
        %661 = vmatpush.bf16.msra.mxu0 0
        %662 = vmatpush.bf16.msra.mxu0 %v640
        %663 = vmatmul.bf16.gmra.mxu0 %v634
        %v664 = vpop.f32.mrf.mxu0
        %v665 = vadd.f32 0.0, %v664
        %v666 = vpop.f32.mrf.mxu0
        %667 = vdwg.mxu0
        %v668 = vadd.f32 %v571, %v652
        %v669 = vadd.f32 %v584, %v665
        %v670 = vld [vmem:[#allocation2] sm:$0x3f]
        %v671 = vunpack.c.l.bf16 %v670
        %v672 = vunpack.c.h.bf16 %v670
        %673 = vrot.lane.b32.xlu0 %v458, 127
        %v674 = vpop.permute.xlu0 %673
        %v675 = vrot.slane %v674, 4
        %vm676 = vcmask 1039360
        %v677 = vsel %vm676, %v675, %v674
        %v680 = vmul.f32 %v671, %v677
        %v681 = vmul.f32 %v672, %v675
        %684 = vst [vmem:[#allocation1] ss:$2 sm:$0xff] %v680
        %s685 = scalar_lea.vmem [#allocation1], 16
        %686 = vst [vmem:[%s685] ss:$2 sm:$0xff] %v681
        %v687 = vld.sshfl [vmem:[#allocation1] sm:$0xff pattern:$0x75316420]
        %v688 = vld.sshfl [vmem:[#allocation1 + $0x8] sm:$0xff pattern:$0x75316420]
        %v689 = vld.sshfl [vmem:[#allocation1 + $0x10] sm:$0xff pattern:$0x75316420]
        %v693 = vpack.c.bf16 %v687, %v687
        %v694 = vpack.c.bf16 %v688, %v688
        %v695 = vpack.c.bf16 %v689, %v689
        %s696 = scalar_lea.vmem %s3, 12
        %v697 = vld [vmem:[%s696] sm:$0xf]
        %701 = vrot.lane.b32.xlu0 %v693, 1
        %v702 = vpop.permute.xlu0 %701
        %703 = vrot.lane.b32.xlu0 %v694, 1
        %v704 = vpop.permute.xlu0 %703
        %705 = vrot.lane.b32.xlu0 %v695, 1
        %v706 = vpop.permute.xlu0 %705
        %vm707 = vcmask 7168
        %v708 = vsel %vm707, %v702, %v704
        %v709 = vsel %vm707, %v704, %v706
        %v711 = vsel %vm503, %v697, 0
        %v714 = vsel %vm507, %v708, 0
        %v717 = vsel %vm507, %v709, 0
        %719 = vmatpush.bf16.msra.mxu0 0
        %720 = vmatpush.bf16.msra.mxu0 0
        %721 = vmatpush.bf16.msra.mxu0 0
        %722 = vmatpush.bf16.msra.mxu0 0
        %723 = vmatpush.bf16.msra.mxu0 0
        %724 = vmatpush.bf16.msra.mxu0 0
        %725 = vmatpush.bf16.msra.mxu0 0
        %726 = vmatpush.bf16.msra.mxu0 %v714
        %727 = vmatmul.bf16.gmra.mxu0 %v711
        %v728 = vpop.f32.mrf.mxu0
        %v729 = vadd.f32 0.0, %v728
        %v730 = vpop.f32.mrf.mxu0
        %731 = vdwg.mxu0
        %732 = vmatpush.bf16.msra.mxu0 0
        %733 = vmatpush.bf16.msra.mxu0 0
        %734 = vmatpush.bf16.msra.mxu0 0
        %735 = vmatpush.bf16.msra.mxu0 0
        %736 = vmatpush.bf16.msra.mxu0 0
        %737 = vmatpush.bf16.msra.mxu0 0
        %738 = vmatpush.bf16.msra.mxu0 0
        %739 = vmatpush.bf16.msra.mxu0 %v717
        %740 = vmatmul.bf16.gmra.mxu0 %v711
        %v741 = vpop.f32.mrf.mxu0
        %v742 = vadd.f32 0.0, %v741
        %v743 = vpop.f32.mrf.mxu0
        %744 = vdwg.mxu0
        %v745 = vadd.f32 %v668, %v729
        %v746 = vadd.f32 %v669, %v742
        %v747 = vld [vmem:[#allocation2 + $0x2] sm:$0xf]
        %s748 = scalar_lea.vmem %s3, 16
        %v749 = vld [vmem:[%s748] sm:$0xf]
        %751 = vst [vmem:[#allocation1] ss:$4 sm:$0xff] %v747
        %v752 = vld.sshfl [vmem:[#allocation1] sm:$0xff pattern:$0x73625140]
        %v753 = vld.sshfl [vmem:[#allocation1 + $0x8] sm:$0xff pattern:$0x73625140]
        %v755 = vsel %vm503, %v749, 0
        %v757 = vsel %vm507, %v752, 0
        %v759 = vsel %vm507, %v753, 0
        %761 = vmatpush.bf16.msra.mxu0 0
        %762 = vmatpush.bf16.msra.mxu0 0
        %763 = vmatpush.bf16.msra.mxu0 0
        %764 = vmatpush.bf16.msra.mxu0 0
        %765 = vmatpush.bf16.msra.mxu0 0
        %766 = vmatpush.bf16.msra.mxu0 0
        %767 = vmatpush.bf16.msra.mxu0 0
        %768 = vmatpush.bf16.msra.mxu0 %v757
        %769 = vmatmul.bf16.gmra.mxu0 %v755
        %v770 = vpop.f32.mrf.mxu0
        %v771 = vadd.f32 0.0, %v770
        %v772 = vpop.f32.mrf.mxu0
        %773 = vdwg.mxu0
        %774 = vmatpush.bf16.msra.mxu0 0
        %775 = vmatpush.bf16.msra.mxu0 0
        %776 = vmatpush.bf16.msra.mxu0 0
        %777 = vmatpush.bf16.msra.mxu0 0
        %778 = vmatpush.bf16.msra.mxu0 0
        %779 = vmatpush.bf16.msra.mxu0 0
        %780 = vmatpush.bf16.msra.mxu0 0
        %781 = vmatpush.bf16.msra.mxu0 %v759
        %782 = vmatmul.bf16.gmra.mxu0 %v755
        %v783 = vpop.f32.mrf.mxu0
        %v784 = vadd.f32 0.0, %v783
        %v785 = vpop.f32.mrf.mxu0
        %786 = vdwg.mxu0
        %v787 = vadd.f32 %v745, %v771
        %v788 = vadd.f32 %v746, %v784
        %v789 = vld [vmem:[#allocation2 + $0x2] sm:$0x3f]
        %v790 = vunpack.c.l.bf16 %v789
        %v791 = vunpack.c.h.bf16 %v789
        %792 = vrot.lane.b32.xlu0 %v595, 1
        %v793 = vpop.permute.xlu0 %792
        %v794 = vrot.slane %v793, 4
        %vm795 = vcmask 7168
        %v796 = vsel %vm795, %v794, %v793
        %v799 = vmul.f32 %v790, %v796
        %v800 = vmul.f32 %v791, %v794
        %803 = vst [vmem:[#allocation1] ss:$2 sm:$0xff] %v799
        %s804 = scalar_lea.vmem [#allocation1], 16
        %805 = vst [vmem:[%s804] ss:$2 sm:$0xff] %v800
        %v806 = vld.sshfl [vmem:[#allocation1] sm:$0xff pattern:$0x75316420]
        %v807 = vld.sshfl [vmem:[#allocation1 + $0x8] sm:$0xff pattern:$0x75316420]
        %v808 = vld.sshfl [vmem:[#allocation1 + $0x10] sm:$0xff pattern:$0x75316420]
        %v812 = vpack.c.bf16 %v806, %v806
        %v813 = vpack.c.bf16 %v807, %v807
        %v814 = vpack.c.bf16 %v808, %v808
        %s815 = scalar_lea.vmem %s3, 20
        %v816 = vld [vmem:[%s815] sm:$0xf]
        %820 = vrot.lane.b32.xlu0 %v812, 127
        %v821 = vpop.permute.xlu0 %820
        %822 = vrot.lane.b32.xlu0 %v813, 127
        %v823 = vpop.permute.xlu0 %822
        %824 = vrot.lane.b32.xlu0 %v814, 127
        %v825 = vpop.permute.xlu0 %824
        %vm826 = vcmask 1039360
        %v827 = vsel %vm826, %v821, %v823
        %v828 = vsel %vm826, %v823, %v825
        %v830 = vsel %vm503, %v816, 0
        %v833 = vsel %vm507, %v827, 0
        %v836 = vsel %vm507, %v828, 0
        %838 = vmatpush.bf16.msra.mxu0 0
        %839 = vmatpush.bf16.msra.mxu0 0
        %840 = vmatpush.bf16.msra.mxu0 0
        %841 = vmatpush.bf16.msra.mxu0 0
        %842 = vmatpush.bf16.msra.mxu0 0
        %843 = vmatpush.bf16.msra.mxu0 0
        %844 = vmatpush.bf16.msra.mxu0 0
        %845 = vmatpush.bf16.msra.mxu0 %v833
        %846 = vmatmul.bf16.gmra.mxu0 %v830
        %v847 = vpop.f32.mrf.mxu0
        %v848 = vadd.f32 0.0, %v847
        %v849 = vpop.f32.mrf.mxu0
        %850 = vdwg.mxu0
        %851 = vmatpush.bf16.msra.mxu0 0
        %852 = vmatpush.bf16.msra.mxu0 0
        %853 = vmatpush.bf16.msra.mxu0 0
        %854 = vmatpush.bf16.msra.mxu0 0
        %855 = vmatpush.bf16.msra.mxu0 0
        %856 = vmatpush.bf16.msra.mxu0 0
        %857 = vmatpush.bf16.msra.mxu0 0
        %858 = vmatpush.bf16.msra.mxu0 %v836
        %859 = vmatmul.bf16.gmra.mxu0 %v830
        %v860 = vpop.f32.mrf.mxu0
        %v861 = vadd.f32 0.0, %v860
        %v862 = vpop.f32.mrf.mxu0
        %863 = vdwg.mxu0
        %v864 = vadd.f32 %v787, %v848
        %v865 = vadd.f32 %v788, %v861
        %v866 = vld [vmem:[#allocation2 + $0x2] sm:$0x3f]
        %v867 = vunpack.c.l.bf16 %v866
        %v868 = vunpack.c.h.bf16 %v866
        %869 = vrot.lane.b32.xlu0 %v458, 15
        %v870 = vpop.permute.xlu0 %869
        %v871 = vrot.slane %v870, 4
        %vm872 = vcmask 121856
        %v873 = vsel %vm872, %v871, %v870
        %v876 = vmul.f32 %v867, %v873
        %v877 = vmul.f32 %v868, %v871
        %880 = vst [vmem:[#allocation1] ss:$2 sm:$0xff] %v876
        %s881 = scalar_lea.vmem [#allocation1], 16
        %882 = vst [vmem:[%s881] ss:$2 sm:$0xff] %v877
        %v883 = vld.sshfl [vmem:[#allocation1] sm:$0xff pattern:$0x75316420]
        %v884 = vld.sshfl [vmem:[#allocation1 + $0x8] sm:$0xff pattern:$0x75316420]
        %v885 = vld.sshfl [vmem:[#allocation1 + $0x10] sm:$0xff pattern:$0x75316420]
        %v889 = vpack.c.bf16 %v883, %v883
        %v890 = vpack.c.bf16 %v884, %v884
        %v891 = vpack.c.bf16 %v885, %v885
        %s892 = scalar_lea.vmem %s3, 24
        %v893 = vld [vmem:[%s892] sm:$0xf]
        %897 = vrot.lane.b32.xlu0 %v889, 113
        %v898 = vpop.permute.xlu0 %897
        %899 = vrot.lane.b32.xlu0 %v890, 113
        %v900 = vpop.permute.xlu0 %899
        %901 = vrot.lane.b32.xlu0 %v891, 113
        %v902 = vpop.permute.xlu0 %901
        %vm903 = vcmask 924672
        %v904 = vsel %vm903, %v898, %v900
        %v905 = vsel %vm903, %v900, %v902
        %v907 = vsel %vm503, %v893, 0
        %v910 = vsel %vm507, %v904, 0
        %v913 = vsel %vm507, %v905, 0
        %915 = vmatpush.bf16.msra.mxu0 0
        %916 = vmatpush.bf16.msra.mxu0 0
        %917 = vmatpush.bf16.msra.mxu0 0
        %918 = vmatpush.bf16.msra.mxu0 0
        %919 = vmatpush.bf16.msra.mxu0 0
        %920 = vmatpush.bf16.msra.mxu0 0
        %921 = vmatpush.bf16.msra.mxu0 0
        %922 = vmatpush.bf16.msra.mxu0 %v910
        %923 = vmatmul.bf16.gmra.mxu0 %v907
        %v924 = vpop.f32.mrf.mxu0
        %v925 = vadd.f32 0.0, %v924
        %v926 = vpop.f32.mrf.mxu0
        %927 = vdwg.mxu0
        %928 = vmatpush.bf16.msra.mxu0 0
        %929 = vmatpush.bf16.msra.mxu0 0
        %930 = vmatpush.bf16.msra.mxu0 0
        %931 = vmatpush.bf16.msra.mxu0 0
        %932 = vmatpush.bf16.msra.mxu0 0
        %933 = vmatpush.bf16.msra.mxu0 0
        %934 = vmatpush.bf16.msra.mxu0 0
        %935 = vmatpush.bf16.msra.mxu0 %v913
        %936 = vmatmul.bf16.gmra.mxu0 %v907
        %v937 = vpop.f32.mrf.mxu0
        %v938 = vadd.f32 0.0, %v937
        %v939 = vpop.f32.mrf.mxu0
        %940 = vdwg.mxu0
        %v941 = vadd.f32 %v864, %v925
        %v942 = vadd.f32 %v865, %v938
        %v943 = vld [vmem:[#allocation2 + $0x2] sm:$0x3f]
        %s944 = scalar_lea.vmem %s3, 28
        %v945 = vld [vmem:[%s944] sm:$0xf]
        %947 = vst [vmem:[#allocation1] ss:$4 sm:$0xff] %v943
        %v948 = vld.sshfl [vmem:[#allocation1] sm:$0xff pattern:$0x73625140]
        %v950 = vld.sshfl [vmem:[#allocation1 + $0x8] sm:$0xff pattern:$0x73625140]
        %v952 = vld.sshfl [vmem:[#allocation1 + $0x10] sm:$0xff pattern:$0x73625140]
        %954 = vrot.lane.b32.xlu0 %v948, 112
        %v955 = vpop.permute.xlu0 %954
        %956 = vrot.lane.b32.xlu0 %v950, 112
        %v957 = vpop.permute.xlu0 %956
        %958 = vrot.lane.b32.xlu0 %v952, 112
        %v959 = vpop.permute.xlu0 %958
        %vm960 = vcmask 916480
        %v961 = vsel %vm960, %v955, %v957
        %v962 = vsel %vm960, %v957, %v959
        %v964 = vsel %vm503, %v945, 0
        %v967 = vsel %vm507, %v961, 0
        %v970 = vsel %vm507, %v962, 0
        %972 = vmatpush.bf16.msra.mxu0 0
        %973 = vmatpush.bf16.msra.mxu0 0
        %974 = vmatpush.bf16.msra.mxu0 0
        %975 = vmatpush.bf16.msra.mxu0 0
        %976 = vmatpush.bf16.msra.mxu0 0
        %977 = vmatpush.bf16.msra.mxu0 0
        %978 = vmatpush.bf16.msra.mxu0 0
        %979 = vmatpush.bf16.msra.mxu0 %v967
        %980 = vmatmul.bf16.gmra.mxu0 %v964
        %v981 = vpop.f32.mrf.mxu0
        %v982 = vadd.f32 0.0, %v981
        %v983 = vpop.f32.mrf.mxu0
        %984 = vdwg.mxu0
        %985 = vmatpush.bf16.msra.mxu0 0
        %986 = vmatpush.bf16.msra.mxu0 0
        %987 = vmatpush.bf16.msra.mxu0 0
        %988 = vmatpush.bf16.msra.mxu0 0
        %989 = vmatpush.bf16.msra.mxu0 0
        %990 = vmatpush.bf16.msra.mxu0 0
        %991 = vmatpush.bf16.msra.mxu0 0
        %992 = vmatpush.bf16.msra.mxu0 %v970
        %993 = vmatmul.bf16.gmra.mxu0 %v964
        %v994 = vpop.f32.mrf.mxu0
        %v995 = vadd.f32 0.0, %v994
        %v996 = vpop.f32.mrf.mxu0
        %997 = vdwg.mxu0
        %v998 = vadd.f32 %v941, %v982
        %v999 = vadd.f32 %v942, %v995
        %v1000 = vld [vmem:[#allocation2 + $0x2] sm:$0x3f]
        %v1001 = vunpack.c.l.bf16 %v1000
        %v1002 = vunpack.c.h.bf16 %v1000
        %1003 = vrot.lane.b32.xlu0 %v595, 17
        %v1004 = vpop.permute.xlu0 %1003
        %v1005 = vrot.slane %v1004, 4
        %vm1006 = vcmask 138240
        %v1007 = vsel %vm1006, %v1005, %v1004
        %v1010 = vmul.f32 %v1001, %v1007
        %v1011 = vmul.f32 %v1002, %v1005
        %1014 = vst [vmem:[#allocation1] ss:$2 sm:$0xff] %v1010
        %s1015 = scalar_lea.vmem [#allocation1], 16
        %1016 = vst [vmem:[%s1015] ss:$2 sm:$0xff] %v1011
        %v1017 = vld.sshfl [vmem:[#allocation1] sm:$0xff pattern:$0x75316420]
        %v1018 = vld.sshfl [vmem:[#allocation1 + $0x8] sm:$0xff pattern:$0x75316420]
        %v1019 = vld.sshfl [vmem:[#allocation1 + $0x10] sm:$0xff pattern:$0x75316420]
        %v1023 = vpack.c.bf16 %v1017, %v1017
        %v1024 = vpack.c.bf16 %v1018, %v1018
        %v1025 = vpack.c.bf16 %v1019, %v1019
        %s1026 = scalar_lea.vmem %s3, 32
        %v1027 = vld [vmem:[%s1026] sm:$0xf]
        %1031 = vrot.lane.b32.xlu0 %v1023, 111
        %v1032 = vpop.permute.xlu0 %1031
        %1033 = vrot.lane.b32.xlu0 %v1024, 111
        %v1034 = vpop.permute.xlu0 %1033
        %1035 = vrot.lane.b32.xlu0 %v1025, 111
        %v1036 = vpop.permute.xlu0 %1035
        %vm1037 = vcmask 908288
        %v1038 = vsel %vm1037, %v1032, %v1034
        %v1039 = vsel %vm1037, %v1034, %v1036
        %v1041 = vsel %vm503, %v1027, 0
        %v1044 = vsel %vm507, %v1038, 0
        %v1047 = vsel %vm507, %v1039, 0
        %1049 = vmatpush.bf16.msra.mxu0 0
        %1050 = vmatpush.bf16.msra.mxu0 0
        %1051 = vmatpush.bf16.msra.mxu0 0
        %1052 = vmatpush.bf16.msra.mxu0 0
        %1053 = vmatpush.bf16.msra.mxu0 0
        %1054 = vmatpush.bf16.msra.mxu0 0
        %1055 = vmatpush.bf16.msra.mxu0 0
        %1056 = vmatpush.bf16.msra.mxu0 %v1044
        %1057 = vmatmul.bf16.gmra.mxu0 %v1041
        %v1058 = vpop.f32.mrf.mxu0
        %v1059 = vadd.f32 0.0, %v1058
        %v1060 = vpop.f32.mrf.mxu0
        %1061 = vdwg.mxu0
        %1062 = vmatpush.bf16.msra.mxu0 0
        %1063 = vmatpush.bf16.msra.mxu0 0
        %1064 = vmatpush.bf16.msra.mxu0 0
        %1065 = vmatpush.bf16.msra.mxu0 0
        %1066 = vmatpush.bf16.msra.mxu0 0
        %1067 = vmatpush.bf16.msra.mxu0 0
        %1068 = vmatpush.bf16.msra.mxu0 0
        %1069 = vmatpush.bf16.msra.mxu0 %v1047
        %1070 = vmatmul.bf16.gmra.mxu0 %v1041
        %v1071 = vpop.f32.mrf.mxu0
        %v1072 = vadd.f32 0.0, %v1071
        %v1073 = vpop.f32.mrf.mxu0
        %1074 = vdwg.mxu0
        %v1075 = vadd.f32 %v998, %v1059
        %v1076 = vadd.f32 %v999, %v1072
        %v1077 = vld [vmem:[%s4] sm:$0xff]
        %1079 = vset.pattern.permute.xlu0 0
        %1080 = vperm.xlu0 %1079, %v1077
        %v1081 = vpop.permute.xlu0 %1080
        %v1083 = vadd.f32 %v1075, %v1081
        %v1084 = vadd.f32 %v1076, %v1081
        %v1085 = vmax.f32 %v1083, 0.0
        %v1086 = vmax.f32 %v1084, 0.0
        %1087 = vst [vmem:[%s328] sm:$0xff] %v1085
        %1088 = vst [vmem:[%s328 + $0x8] sm:$0xff] %v1086
        %s1089 = sand.u32 %s183, 1
        %s1090 = scalar_lea.sflag [#allocation4], %s1089
        %s1091 = sand.u32 %s183, 1
        %s1092 = smul.addr %s1091, 16
        %s1093 = scalar_lea.vmem [#allocation3], %s1092
        // Predicated region
        $region57: #{tpu_custom_call.1} parent=39 // pred_check
          %p1094 = pneg %p193
        $region58: #{tpu_custom_call.1} parent=39 // pred_check_branch
          %1096 = sbr.rel (%p1094) target = $region60
        $region59: #{tpu_custom_call.1} parent=39 // pred_region
          %s1097 = smul.u32 2, %s24
          %1099 = vsyncadd %s1090, 0
          %s1100 = smul.addr %s23, 2
          %s1101 = sadd.s32 %s1097, %s1100
          %s1102 = smul.addr %s1101, 8
          %s1103 = scalar_lea.hbm %s5, %s1102
          %s1105 = sshll.u32 %s1093, 4
          %s1106 = int_to_ptr.vmem [resolvable:$true] %s1105
          %s1107 = sshll.u32 %s1103, 4
          %s1108 = int_to_ptr.hbm [resolvable:$true] %s1107
          %1110 = dma.vmem_to_hbm [thread:$0]  %s1106, 256, %s1108, %s1090
        $region60: #{tpu_custom_call.1} parent=39 // pred_fallthru
          _
      $region40: #{tpu_custom_call.1} parent=5 // pred_fallthru
        _
      %p1111 = scmp.le.s32.totalorder 2, %s14
      // Predicated region
      $region61: #{tpu_custom_call.1} parent=5 // pred_check
        %p1112 = pneg %p1111
      $region62: #{tpu_custom_call.1} parent=5 // pred_check_branch
        %1114 = sbr.rel (%p1112) target = $region64
      $region63: #{tpu_custom_call.1} parent=5 // pred_region
        %s1115 = ssub.s32 %s14, 2
        // Predicated region
        $region65: #{tpu_custom_call.1} parent=63 // pred_check
          %p1116 = pneg %p199
        $region66: #{tpu_custom_call.1} parent=63 // pred_check_branch
          %1118 = sbr.rel (%p1116) target = $region68
        $region67: #{tpu_custom_call.1} parent=63 // pred_region
          %s1119 = sand.u32 %s184, 1
          %s1120 = scalar_lea.sflag [#allocation4], %s1119
          %s1121 = sand.u32 %s184, 1
          %s1122 = smul.addr %s1121, 16
          %s1123 = scalar_lea.vmem [#allocation3], %s1122
          %1125 = dma.done %s1120, 256
        $region68: #{tpu_custom_call.1} parent=63 // pred_fallthru
          _
      $region64: #{tpu_custom_call.1} parent=5 // pred_fallthru
        _
    $region6: #{tpu_custom_call.1} parent=1 // loop_footer
      %s18 = sadd.s32 1, %s14
    $region7: #{tpu_custom_call.1} parent=1 // loop_footer_branch
      %13 = sbr.rel target = $region3
    $region8: #{tpu_custom_call.1} parent=1 // loop_exit
      _
    %1126 = vsyncpa [#allocation4], 1
    %s1127 = scalar_lea.sflag [#allocation4], 1
    %1128 = vsyncpa %s1127, 1

</llo_original>
